<compile_context>
chip_gen: v7x
topology: tpu7x:2x2x1
jax: 0.10.0
libtpu: 0.0.40
codegen_flags: <defaults>
</compile_context>

<pallas_src>
import functools

import jax
import jax.numpy as jnp
from jax.experimental import pallas as pl
from jax.experimental.pallas import tpu as pltpu

_LANES = 128
_SUBLANES = 8


def _ttfs_kernel(x_ref, o_ref, *, step):
    # x_ref : (TILE_R, 128) float32  -- one row tile of the flattened input
    # o_ref : (step, TILE_R, 128) float32 -- all time-steps for this tile
    x = x_ref[...]
    t = x * jnp.float32(step)
    # For t in (step-i-1, step-i] the firing step is i == step - ceil(t);
    # hoisting this out of the step loop leaves 1 cmp + 1 select per step.
    bucket = jnp.float32(step) - jnp.ceil(t)
    for i in range(step):  # step is a small compile-time constant
        val = jnp.float32(1.0 / (i + 1))
        o_ref[i, :, :] = jnp.where(bucket == jnp.float32(i), val,
                                   jnp.float32(0.0))


def _pick_row_tile(rows, step, vmem_budget_bytes):
    # Per grid step VMEM ~= 2 * (step + 1) * TILE_R * 128 * 4 bytes
    # (double-buffered input block + double-buffered (step, TILE_R, 128) out).
    max_by_vmem = vmem_budget_bytes // (_LANES * 4 * 2 * (step + 1))
    tile = (max_by_vmem // _SUBLANES) * _SUBLANES
    tile = max(_SUBLANES, min(2048, tile))
    return min(tile, rows)


def ttfs_encode(inputs, step, *, vmem_budget_bytes=12 * 1024 * 1024):
    """Pallas TTFS encoder.  inputs: any-shape float array.  Returns
    (step, *inputs.shape) float32, matching the PyTorch Encoder.ttfs()."""
    x = jnp.asarray(inputs, jnp.float32)
    orig_shape = x.shape
    n = x.size

    # Flatten to a lane-dense (rows, 128) slab, rows a multiple of 8.
    rows = -(-n // _LANES)                          # ceil
    rows = -(-rows // _SUBLANES) * _SUBLANES        # round up to multiple of 8

    tile = _pick_row_tile(rows, step, vmem_budget_bytes)
    rows_p = -(-rows // tile) * tile                # rows padded to tile mult
    padded = rows_p * _LANES
    grid_r = rows_p // tile

    x_flat = x.reshape(-1)
    if padded != n:
        x_flat = jnp.pad(x_flat, (0, padded - n))
    x2d = x_flat.reshape(rows_p, _LANES)

    out = pl.pallas_call(
        functools.partial(_ttfs_kernel, step=step),
        out_shape=jax.ShapeDtypeStruct((step, rows_p, _LANES), jnp.float32),
        grid_spec=pltpu.PrefetchScalarGridSpec(
            num_scalar_prefetch=0,
            grid=(grid_r,),
            in_specs=[pl.BlockSpec((tile, _LANES), lambda r: (r, 0))],
            out_specs=pl.BlockSpec((step, tile, _LANES), lambda r: (0, r, 0)),
        ),
        compiler_params=pltpu.CompilerParams(
            dimension_semantics=("parallel",)),
        cost_estimate=pl.CostEstimate(
            flops=int((2 + 2 * step) * padded),
            transcendentals=0,
            bytes_accessed=int((1 + step) * padded * 4)),
    )(x2d)

    if padded == n:
        # Fast path: no wrapper-side slice copy of the (step x N) output.
        return out.reshape((step,) + orig_shape)
    return out.reshape(step, padded)[:, :n].reshape((step,) + orig_shape)


class EncoderPallas:
    """Mirror of the PyTorch Encoder (encode_type='ttfs', no deletion/shift)."""
    # TODO(synk): Encoder.delete / Encoder.shift are referenced but not defined
    #             in the given module, so deletion_prob / shift_var are ignored.
    def __init__(self, step, encode_type="ttfs"):
        assert encode_type == "ttfs", "only 'ttfs' implemented in Pallas"
        self.step = step

    def __call__(self, inputs, deletion_prob=None, shift_var=None):
        return ttfs_encode(inputs, self.step)


def _ttfs_reference(inputs, step):
    """Pure-JAX reference for correctness checking."""
    x = jnp.asarray(inputs, jnp.float32)
    i = jnp.arange(step, dtype=jnp.float32).reshape((step,) + (1,) * x.ndim)
    t = x[None] * step
    mask = (t <= step - i) & (t > step - i - 1)
    return jnp.where(mask, 1.0 / (i + 1.0), 0.0)


if __name__ == "__main__":
    key = jax.random.PRNGKey(0)

    # Case 1: small NCHW-style input; element count is lane-dense already
    # (2*4*16*16 = 2048), so the zero-copy fast path is exercised.
    step = 8
    x = jax.random.uniform(key, (2, 4, 16, 16), dtype=jnp.float32)
    enc = EncoderPallas(step=step)
    out = jax.block_until_ready(enc(x))
    ref = _ttfs_reference(x, step)
    assert out.shape == (step, 2, 4, 16, 16)
    assert jnp.array_equal(out, ref), "mismatch vs reference (case 1)"

    # Case 2: ragged element count (3*5*7 = 105) exercises the pad/slice path,
    # plus a different step count.
    step2 = 5
    x2 = jax.random.uniform(jax.random.PRNGKey(1), (3, 5, 7),
                            dtype=jnp.float32)
    out2 = jax.block_until_ready(ttfs_encode(x2, step2))
    ref2 = _ttfs_reference(x2, step2)
    assert out2.shape == (step2, 3, 5, 7)
    assert jnp.array_equal(out2, ref2), "mismatch vs reference (case 2)"

    print("KERNEL_OK")
</pallas_src>

<mosaic_0001>
module attributes {stable_mosaic.version = 11 : i64} {
  func.func @_ttfs_kernel(%arg0: i32, %arg1: memref<16x128xf32, #tpu.memory_space<vmem>>, %arg2: memref<8x16x128xf32, #tpu.memory_space<vmem>>) attributes {dimension_semantics = [#tpu.dimension_semantics<parallel>], iteration_bounds = array<i64: 1>, scalar_prefetch = 0 : i64, scratch_operands = 0 : i64, tpu.core_type = #tpu.core_type<tc>, window_params = [{transform_indices = @transform_0, window_bounds = array<i64: 16, 128>}, {transform_indices = @transform_1, window_bounds = array<i64: 8, 16, 128>}]} {
    %c0 = arith.constant 0 : index
    %c0_0 = arith.constant 0 : index
    %0 = vector.load %arg1[%c0, %c0_0] : memref<16x128xf32, #tpu.memory_space<vmem>>, vector<16x128xf32>
    %cst = arith.constant 8.000000e+00 : f32
    %1 = vector.broadcast %cst : f32 to vector<16x128xf32>
    %2 = arith.mulf %0, %1 : vector<16x128xf32>
    %3 = math.ceil %2 : vector<16x128xf32>
    %cst_1 = arith.constant 8.000000e+00 : f32
    %4 = vector.broadcast %cst_1 : f32 to vector<16x128xf32>
    %5 = arith.subf %4, %3 : vector<16x128xf32>
    %cst_2 = arith.constant 0.000000e+00 : f32
    %6 = vector.broadcast %cst_2 : f32 to vector<16x128xf32>
    %7 = arith.cmpf oeq, %5, %6 : vector<16x128xf32>
    %cst_3 = arith.constant 1.000000e+00 : f32
    %cst_4 = arith.constant 0.000000e+00 : f32
    %8 = vector.broadcast %cst_3 : f32 to vector<16x128xf32>
    %9 = vector.broadcast %cst_4 : f32 to vector<16x128xf32>
    %10 = arith.select %7, %8, %9 : vector<16x128xi1>, vector<16x128xf32>
    %c0_5 = arith.constant 0 : index
    %c0_6 = arith.constant 0 : index
    %c0_7 = arith.constant 0 : index
    %11 = vector.load %arg2[%c0_5, %c0_6, %c0_7] : memref<8x16x128xf32, #tpu.memory_space<vmem>>, vector<1x16x128xf32>
    %12 = vector.shape_cast %11 : vector<1x16x128xf32> to vector<16x128xf32>
    %13 = vector.shape_cast %10 : vector<16x128xf32> to vector<1x16x128xf32>
    tpu.vector_store %arg2[%c0_5, %c0_6, %c0_7], %13 {strides = array<i32>} : memref<8x16x128xf32, #tpu.memory_space<vmem>>, vector<1x16x128xf32>,
    %cst_8 = arith.constant 1.000000e+00 : f32
    %14 = vector.broadcast %cst_8 : f32 to vector<16x128xf32>
    %15 = arith.cmpf oeq, %5, %14 : vector<16x128xf32>
    %cst_9 = arith.constant 5.000000e-01 : f32
    %cst_10 = arith.constant 0.000000e+00 : f32
    %16 = vector.broadcast %cst_9 : f32 to vector<16x128xf32>
    %17 = vector.broadcast %cst_10 : f32 to vector<16x128xf32>
    %18 = arith.select %15, %16, %17 : vector<16x128xi1>, vector<16x128xf32>
    %c1 = arith.constant 1 : index
    %c0_11 = arith.constant 0 : index
    %c0_12 = arith.constant 0 : index
    %19 = vector.load %arg2[%c1, %c0_11, %c0_12] : memref<8x16x128xf32, #tpu.memory_space<vmem>>, vector<1x16x128xf32>
    %20 = vector.shape_cast %19 : vector<1x16x128xf32> to vector<16x128xf32>
    %21 = vector.shape_cast %18 : vector<16x128xf32> to vector<1x16x128xf32>
    tpu.vector_store %arg2[%c1, %c0_11, %c0_12], %21 {strides = array<i32>} : memref<8x16x128xf32, #tpu.memory_space<vmem>>, vector<1x16x128xf32>,
    %cst_13 = arith.constant 2.000000e+00 : f32
    %22 = vector.broadcast %cst_13 : f32 to vector<16x128xf32>
    %23 = arith.cmpf oeq, %5, %22 : vector<16x128xf32>
    %cst_14 = arith.constant 0.333333343 : f32
    %cst_15 = arith.constant 0.000000e+00 : f32
    %24 = vector.broadcast %cst_14 : f32 to vector<16x128xf32>
    %25 = vector.broadcast %cst_15 : f32 to vector<16x128xf32>
    %26 = arith.select %23, %24, %25 : vector<16x128xi1>, vector<16x128xf32>
    %c2 = arith.constant 2 : index
    %c0_16 = arith.constant 0 : index
    %c0_17 = arith.constant 0 : index
    %27 = vector.load %arg2[%c2, %c0_16, %c0_17] : memref<8x16x128xf32, #tpu.memory_space<vmem>>, vector<1x16x128xf32>
    %28 = vector.shape_cast %27 : vector<1x16x128xf32> to vector<16x128xf32>
    %29 = vector.shape_cast %26 : vector<16x128xf32> to vector<1x16x128xf32>
    tpu.vector_store %arg2[%c2, %c0_16, %c0_17], %29 {strides = array<i32>} : memref<8x16x128xf32, #tpu.memory_space<vmem>>, vector<1x16x128xf32>,
    %cst_18 = arith.constant 3.000000e+00 : f32
    %30 = vector.broadcast %cst_18 : f32 to vector<16x128xf32>
    %31 = arith.cmpf oeq, %5, %30 : vector<16x128xf32>
    %cst_19 = arith.constant 2.500000e-01 : f32
    %cst_20 = arith.constant 0.000000e+00 : f32
    %32 = vector.broadcast %cst_19 : f32 to vector<16x128xf32>
    %33 = vector.broadcast %cst_20 : f32 to vector<16x128xf32>
    %34 = arith.select %31, %32, %33 : vector<16x128xi1>, vector<16x128xf32>
    %c3 = arith.constant 3 : index
    %c0_21 = arith.constant 0 : index
    %c0_22 = arith.constant 0 : index
    %35 = vector.load %arg2[%c3, %c0_21, %c0_22] : memref<8x16x128xf32, #tpu.memory_space<vmem>>, vector<1x16x128xf32>
    %36 = vector.shape_cast %35 : vector<1x16x128xf32> to vector<16x128xf32>
    %37 = vector.shape_cast %34 : vector<16x128xf32> to vector<1x16x128xf32>
    tpu.vector_store %arg2[%c3, %c0_21, %c0_22], %37 {strides = array<i32>} : memref<8x16x128xf32, #tpu.memory_space<vmem>>, vector<1x16x128xf32>,
    %cst_23 = arith.constant 4.000000e+00 : f32
    %38 = vector.broadcast %cst_23 : f32 to vector<16x128xf32>
    %39 = arith.cmpf oeq, %5, %38 : vector<16x128xf32>
    %cst_24 = arith.constant 2.000000e-01 : f32
    %cst_25 = arith.constant 0.000000e+00 : f32
    %40 = vector.broadcast %cst_24 : f32 to vector<16x128xf32>
    %41 = vector.broadcast %cst_25 : f32 to vector<16x128xf32>
    %42 = arith.select %39, %40, %41 : vector<16x128xi1>, vector<16x128xf32>
    %c4 = arith.constant 4 : index
    %c0_26 = arith.constant 0 : index
    %c0_27 = arith.constant 0 : index
    %43 = vector.load %arg2[%c4, %c0_26, %c0_27] : memref<8x16x128xf32, #tpu.memory_space<vmem>>, vector<1x16x128xf32>
    %44 = vector.shape_cast %43 : vector<1x16x128xf32> to vector<16x128xf32>
    %45 = vector.shape_cast %42 : vector<16x128xf32> to vector<1x16x128xf32>
    tpu.vector_store %arg2[%c4, %c0_26, %c0_27], %45 {strides = array<i32>} : memref<8x16x128xf32, #tpu.memory_space<vmem>>, vector<1x16x128xf32>,
    %cst_28 = arith.constant 5.000000e+00 : f32
    %46 = vector.broadcast %cst_28 : f32 to vector<16x128xf32>
    %47 = arith.cmpf oeq, %5, %46 : vector<16x128xf32>
    %cst_29 = arith.constant 0.166666672 : f32
    %cst_30 = arith.constant 0.000000e+00 : f32
    %48 = vector.broadcast %cst_29 : f32 to vector<16x128xf32>
    %49 = vector.broadcast %cst_30 : f32 to vector<16x128xf32>
    %50 = arith.select %47, %48, %49 : vector<16x128xi1>, vector<16x128xf32>
    %c5 = arith.constant 5 : index
    %c0_31 = arith.constant 0 : index
    %c0_32 = arith.constant 0 : index
    %51 = vector.load %arg2[%c5, %c0_31, %c0_32] : memref<8x16x128xf32, #tpu.memory_space<vmem>>, vector<1x16x128xf32>
    %52 = vector.shape_cast %51 : vector<1x16x128xf32> to vector<16x128xf32>
    %53 = vector.shape_cast %50 : vector<16x128xf32> to vector<1x16x128xf32>
    tpu.vector_store %arg2[%c5, %c0_31, %c0_32], %53 {strides = array<i32>} : memref<8x16x128xf32, #tpu.memory_space<vmem>>, vector<1x16x128xf32>,
    %cst_33 = arith.constant 6.000000e+00 : f32
    %54 = vector.broadcast %cst_33 : f32 to vector<16x128xf32>
    %55 = arith.cmpf oeq, %5, %54 : vector<16x128xf32>
    %cst_34 = arith.constant 0.142857149 : f32
    %cst_35 = arith.constant 0.000000e+00 : f32
    %56 = vector.broadcast %cst_34 : f32 to vector<16x128xf32>
    %57 = vector.broadcast %cst_35 : f32 to vector<16x128xf32>
    %58 = arith.select %55, %56, %57 : vector<16x128xi1>, vector<16x128xf32>
    %c6 = arith.constant 6 : index
    %c0_36 = arith.constant 0 : index
    %c0_37 = arith.constant 0 : index
    %59 = vector.load %arg2[%c6, %c0_36, %c0_37] : memref<8x16x128xf32, #tpu.memory_space<vmem>>, vector<1x16x128xf32>
    %60 = vector.shape_cast %59 : vector<1x16x128xf32> to vector<16x128xf32>
    %61 = vector.shape_cast %58 : vector<16x128xf32> to vector<1x16x128xf32>
    tpu.vector_store %arg2[%c6, %c0_36, %c0_37], %61 {strides = array<i32>} : memref<8x16x128xf32, #tpu.memory_space<vmem>>, vector<1x16x128xf32>,
    %cst_38 = arith.constant 7.000000e+00 : f32
    %62 = vector.broadcast %cst_38 : f32 to vector<16x128xf32>
    %63 = arith.cmpf oeq, %5, %62 : vector<16x128xf32>
    %cst_39 = arith.constant 1.250000e-01 : f32
    %cst_40 = arith.constant 0.000000e+00 : f32
    %64 = vector.broadcast %cst_39 : f32 to vector<16x128xf32>
    %65 = vector.broadcast %cst_40 : f32 to vector<16x128xf32>
    %66 = arith.select %63, %64, %65 : vector<16x128xi1>, vector<16x128xf32>
    %c7 = arith.constant 7 : index
    %c0_41 = arith.constant 0 : index
    %c0_42 = arith.constant 0 : index
    %67 = vector.load %arg2[%c7, %c0_41, %c0_42] : memref<8x16x128xf32, #tpu.memory_space<vmem>>, vector<1x16x128xf32>
    %68 = vector.shape_cast %67 : vector<1x16x128xf32> to vector<16x128xf32>
    %69 = vector.shape_cast %66 : vector<16x128xf32> to vector<1x16x128xf32>
    tpu.vector_store %arg2[%c7, %c0_41, %c0_42], %69 {strides = array<i32>} : memref<8x16x128xf32, #tpu.memory_space<vmem>>, vector<1x16x128xf32>,
    return
  }
  func.func @transform_0(%arg0: i32) -> (i32, i32) {
    %c0_i32 = arith.constant 0 : i32
    %c0_i32_0 = arith.constant 0 : i32
    return %arg0, %c0_i32 : i32, i32
  }
  func.func @transform_1(%arg0: i32) -> (i32, i32, i32) {
    %c0_i32 = arith.constant 0 : i32
    %c0_i32_0 = arith.constant 0 : i32
    %c0_i32_1 = arith.constant 0 : i32
    return %c0_i32, %arg0, %c0_i32_0 : i32, i32, i32
  }
}

</mosaic_0001>

<llo_original>
// kernel: tpu_custom_call.1
$region0: #{tpu_custom_call.1}
  #allocation0 [shape = 'u32[]', space=smem, size = 0x4, offset = 0x4, fixed_abs, tag = 'smem constant byte address 0x4 - core index']
  #allocation1 [shape = 'u32[144,128]{1,0:T(1,128)}', space=vmem, size = 0x12000, scoped, tag = 'internal scratch']
  %s0 = inlined_call_operand.hbm [shape: f32[16,128], index: 0, kind: input, shape index: {}]
  %s1 = inlined_call_operand.hbm [shape: f32[8,16,128], index: 1, kind: output, shape index: {}]
  %s2 = sld [smem:[#allocation0]]
  $region18: #{tpu_custom_call.1} parent=0
    _
  %s4 = ssub.s32 1, %s2
  %s5 = scalar_select 0, %s4, %s2
  $region1: #{tpu_custom_call.1} parent=0
    #allocation2 [shape = 'u8[8192]{0}', space=vmem, size = 0x2000, scoped, tag = 'input window, operand 0, single buffered']
    #allocation3 [shape = 's32[1]{0}', space=sflag, size = 0x4, scoped, tag = 'scoped memory for tpu_custom_call.1']
    #allocation4 [shape = 's32[1]{0}', space=sflag, size = 0x4, scoped, tag = 'scoped memory for tpu_custom_call.1']
    #allocation5 [shape = 'u8[65536]{0}', space=vmem, size = 0x10000, scoped, tag = 'output window, operand 0, single buffered']
    %6 = vsyncpa [#allocation3], 0
    %7 = vsyncpa [#allocation4], 0
    // Predicated region
    $region2: #{tpu_custom_call.1} parent=1 // pred_check
      _
    $region3: #{tpu_custom_call.1} parent=1 // pred_check_branch
      %9 = sbr.rel (0) target = $region5
    $region4: #{tpu_custom_call.1} parent=1 // pred_region
      %s11 = ssub.s32 256, 256
      %12 = vsyncadd [#allocation3], %s11
      %s13 = sshll.u32 [#allocation2], 4
      %s14 = int_to_ptr.vmem [resolvable:$true] %s13
      %19 = dma.hbm_to_vmem [thread:$0]  %s0, 256, %s14, [#allocation3], 128, 128, 8
    $region5: #{tpu_custom_call.1} parent=1 // pred_fallthru
      _
    // Predicated region
    $region6: #{tpu_custom_call.1} parent=1 // pred_check
      _
    $region7: #{tpu_custom_call.1} parent=1 // pred_check_branch
      %21 = sbr.rel (0) target = $region9
    $region8: #{tpu_custom_call.1} parent=1 // pred_region
      %22 = dma.done [#allocation3], 256
    $region9: #{tpu_custom_call.1} parent=1 // pred_fallthru
      _
    %v23 = vld [vmem:[#allocation2] sm:$0xff]
    %v24 = vld [vmem:[#allocation2 + $0x8] sm:$0xff]
    %v25 = vmul.f32 %v23, 8.0
    %v26 = vmul.f32 %v24, 8.0
    %v27 = vceil.f32 %v25
    %v28 = vceil.f32 %v26
    %v29 = vsub.f32 8.0, %v27
    %v30 = vsub.f32 8.0, %v28
    %vm31 = vcmp.eq.f32.partialorder %v29, 0.0
    %vm32 = vcmp.eq.f32.partialorder %v30, 0.0
    %v33 = vsel %vm31, 1.0, 0.0
    %v34 = vsel %vm32, 1.0, 0.0
    %35 = vst [vmem:[#allocation5] sm:$0xff] %v33
    %36 = vst [vmem:[#allocation5 + $0x8] sm:$0xff] %v34
    %vm37 = vcmp.eq.f32.partialorder %v29, 1.0
    %vm38 = vcmp.eq.f32.partialorder %v30, 1.0
    %v39 = vsel %vm37, 0.5, 0.0
    %v40 = vsel %vm38, 0.5, 0.0
    %s41 = scalar_lea.vmem [#allocation5], 16
    %42 = vst [vmem:[%s41] sm:$0xff] %v39
    %43 = vst [vmem:[%s41 + $0x8] sm:$0xff] %v40
    %vm44 = vcmp.eq.f32.partialorder %v29, 2.0
    %vm45 = vcmp.eq.f32.partialorder %v30, 2.0
    %v46 = vsel %vm44, 0.33333334, 0.0
    %v47 = vsel %vm45, 0.33333334, 0.0
    %s48 = scalar_lea.vmem [#allocation5], 32
    %49 = vst [vmem:[%s48] sm:$0xff] %v46
    %50 = vst [vmem:[%s48 + $0x8] sm:$0xff] %v47
    %vm51 = vcmp.eq.f32.partialorder %v29, 3.0
    %vm52 = vcmp.eq.f32.partialorder %v30, 3.0
    %v53 = vsel %vm51, 0.25, 0.0
    %v54 = vsel %vm52, 0.25, 0.0
    %s55 = scalar_lea.vmem [#allocation5], 48
    %56 = vst [vmem:[%s55] sm:$0xff] %v53
    %57 = vst [vmem:[%s55 + $0x8] sm:$0xff] %v54
    %vm58 = vcmp.eq.f32.partialorder %v29, 4.0
    %vm59 = vcmp.eq.f32.partialorder %v30, 4.0
    %v60 = vsel %vm58, 0.2, 0.0
    %v61 = vsel %vm59, 0.2, 0.0
    %s62 = scalar_lea.vmem [#allocation5], 64
    %63 = vst [vmem:[%s62] sm:$0xff] %v60
    %64 = vst [vmem:[%s62 + $0x8] sm:$0xff] %v61
    %vm65 = vcmp.eq.f32.partialorder %v29, 5.0
    %vm66 = vcmp.eq.f32.partialorder %v30, 5.0
    %v67 = vsel %vm65, 0.16666667, 0.0
    %v68 = vsel %vm66, 0.16666667, 0.0
    %s69 = scalar_lea.vmem [#allocation5], 80
    %70 = vst [vmem:[%s69] sm:$0xff] %v67
    %71 = vst [vmem:[%s69 + $0x8] sm:$0xff] %v68
    %vm72 = vcmp.eq.f32.partialorder %v29, 6.0
    %vm73 = vcmp.eq.f32.partialorder %v30, 6.0
    %v74 = vsel %vm72, 0.14285715, 0.0
    %v75 = vsel %vm73, 0.14285715, 0.0
    %s76 = scalar_lea.vmem [#allocation5], 96
    %77 = vst [vmem:[%s76] sm:$0xff] %v74
    %78 = vst [vmem:[%s76 + $0x8] sm:$0xff] %v75
    %vm79 = vcmp.eq.f32.partialorder %v29, 7.0
    %vm80 = vcmp.eq.f32.partialorder %v30, 7.0
    %v81 = vsel %vm79, 0.125, 0.0
    %v82 = vsel %vm80, 0.125, 0.0
    %s83 = scalar_lea.vmem [#allocation5], 112
    %84 = vst [vmem:[%s83] sm:$0xff] %v81
    %85 = vst [vmem:[%s83 + $0x8] sm:$0xff] %v82
    // Predicated region
    $region10: #{tpu_custom_call.1} parent=1 // pred_check
      _
    $region11: #{tpu_custom_call.1} parent=1 // pred_check_branch
      %87 = sbr.rel (0) target = $region13
    $region12: #{tpu_custom_call.1} parent=1 // pred_region
      %s89 = ssub.s32 2048, 2048
      %90 = vsyncadd [#allocation4], %s89
      %s91 = sshll.u32 [#allocation5], 4
      %s92 = int_to_ptr.vmem [resolvable:$true] %s91
      %97 = dma.vmem_to_hbm [thread:$0]  %s92, 2048, %s1, [#allocation4], 128, 128, 8
    $region13: #{tpu_custom_call.1} parent=1 // pred_fallthru
      _
    // Predicated region
    $region14: #{tpu_custom_call.1} parent=1 // pred_check
      _
    $region15: #{tpu_custom_call.1} parent=1 // pred_check_branch
      %99 = sbr.rel (0) target = $region17
    $region16: #{tpu_custom_call.1} parent=1 // pred_region
      %100 = dma.done [#allocation4], 2048
    $region17: #{tpu_custom_call.1} parent=1 // pred_fallthru
      _
    %101 = vsyncpa [#allocation3], 1
    %102 = vsyncpa [#allocation4], 1

</llo_original>
